<compile_context>
chip_gen: v7x
topology: tpu7x:2x2x1
jax: 0.10.0
libtpu: 0.0.40
codegen_flags: <defaults>
</compile_context>

<pallas_src>
import jax
import jax.numpy as jnp
from jax.experimental import pallas as pl
from jax.experimental.pallas import tpu as pltpu


def _complex_linear_kernel(x_ref, w_ref, b_ref, out_ref):
    """One fused MXU matmul per (batch-tile) grid step.

    x_ref:   (bm, 2*in)   VMEM tile of the input
    w_ref:   (2*in, 2*out) fused real-form weight (resident across grid steps)
    b_ref:   (1, 2*out)    fused bias (resident)
    out_ref: (bm, 2*out)   output tile
    """
    acc = jnp.dot(x_ref[...], w_ref[...], preferred_element_type=jnp.float32)
    out_ref[...] = (acc + b_ref[...].astype(jnp.float32)).astype(out_ref.dtype)


def complex_linear(x, w_r, b_r, w_i, b_i, *, block_b=256):
    """x: (B, 2*in_features); w_*: (out_features, in_features); b_*: (out_features,)."""
    B, two_in = x.shape
    in_features = two_in // 2
    out_features = w_r.shape[0]
    assert w_r.shape == (out_features, in_features)
    assert w_i.shape == (out_features, in_features)

    # Build the fused (already transposed) real-form weight and bias once, in
    # the wrapper, so the kernel hot path is a single matmul + bias add.
    w_big = jnp.concatenate(
        [
            jnp.concatenate([w_r.T, w_i.T], axis=1),     # rows for x_r
            jnp.concatenate([-w_i.T, w_r.T], axis=1),    # rows for x_i
        ],
        axis=0,
    )  # (2*in, 2*out)
    b_big = jnp.concatenate([b_r - b_i, b_r + b_i]).reshape(1, 2 * out_features)

    bm = min(block_b, B)
    grid = (pl.cdiv(B, bm),)

    return pl.pallas_call(
        _complex_linear_kernel,
        out_shape=jax.ShapeDtypeStruct((B, 2 * out_features), x.dtype),
        grid=grid,
        in_specs=[
            # x tile marches down the batch axis; Pallas double-buffers it.
            pl.BlockSpec((bm, 2 * in_features), lambda i: (i, 0)),
            # Fused weight + bias: constant index_map -> stay VMEM-resident.
            pl.BlockSpec((2 * in_features, 2 * out_features), lambda i: (0, 0)),
            pl.BlockSpec((1, 2 * out_features), lambda i: (0, 0)),
        ],
        out_specs=pl.BlockSpec((bm, 2 * out_features), lambda i: (i, 0)),
        compiler_params=pltpu.CompilerParams(
            dimension_semantics=("parallel",),
        ),
    )(x, w_big, b_big)


def _reference(x, w_r, b_r, w_i, b_i):
    in_features = x.shape[1] // 2
    x_r, x_i = x[:, :in_features], x[:, in_features:]
    fc_r = lambda t: t @ w_r.T + b_r
    fc_i = lambda t: t @ w_i.T + b_i
    out_r = fc_r(x_r) - fc_i(x_i)
    out_i = fc_r(x_i) + fc_i(x_r)
    return jnp.concatenate([out_r, out_i], axis=-1)


if __name__ == "__main__":
    B = 128
    in_features = 32
    out_features = 32

    key = jax.random.PRNGKey(0)
    kx, kwr, kbr, kwi, kbi = jax.random.split(key, 5)

    x = jax.random.normal(kx, (B, 2 * in_features), dtype=jnp.float32)

    # PyTorch nn.Linear default init: U(-1/sqrt(in_features), 1/sqrt(in_features))
    bound = 1.0 / (in_features ** 0.5)
    w_r = jax.random.uniform(kwr, (out_features, in_features), jnp.float32, -bound, bound)
    b_r = jax.random.uniform(kbr, (out_features,), jnp.float32, -bound, bound)
    w_i = jax.random.uniform(kwi, (out_features, in_features), jnp.float32, -bound, bound)
    b_i = jax.random.uniform(kbi, (out_features,), jnp.float32, -bound, bound)

    # block_b=64 -> grid of 2 batch tiles, exercising the pipelined/parallel path.
    out = complex_linear(x, w_r, b_r, w_i, b_i, block_b=64)
    out = jax.block_until_ready(out)

    ref = _reference(x, w_r, b_r, w_i, b_i)
    assert out.shape == (B, 2 * out_features)
    assert jnp.allclose(out, ref, atol=1e-5, rtol=1e-5), "mismatch vs reference"

    print("KERNEL_OK")
</pallas_src>

<mosaic_0001>
module attributes {stable_mosaic.version = 11 : i64} {
  func.func @_complex_linear_kernel(%arg0: i32, %arg1: memref<64x64xf32, #tpu.memory_space<vmem>>, %arg2: memref<64x64xf32, #tpu.memory_space<vmem>>, %arg3: memref<1x64xf32, #tpu.memory_space<vmem>>, %arg4: memref<64x64xf32, #tpu.memory_space<vmem>>) attributes {dimension_semantics = [#tpu.dimension_semantics<parallel>], iteration_bounds = array<i64: 2>, scalar_prefetch = 0 : i64, scratch_operands = 0 : i64, tpu.core_type = #tpu.core_type<tc>, window_params = [{transform_indices = @transform_0, window_bounds = array<i64: 64, 64>}, {pipeline_mode = #tpu.pipeline_mode<synchronous>, transform_indices = @transform_1, window_bounds = array<i64: 64, 64>}, {pipeline_mode = #tpu.pipeline_mode<synchronous>, transform_indices = @transform_2, window_bounds = array<i64: 1, 64>}, {transform_indices = @transform_3, window_bounds = array<i64: 64, 64>}]} {
    %c0 = arith.constant 0 : index
    %c0_0 = arith.constant 0 : index
    %0 = vector.load %arg1[%c0, %c0_0] : memref<64x64xf32, #tpu.memory_space<vmem>>, vector<64x64xf32>
    %c0_1 = arith.constant 0 : index
    %c0_2 = arith.constant 0 : index
    %1 = vector.load %arg2[%c0_1, %c0_2] : memref<64x64xf32, #tpu.memory_space<vmem>>, vector<64x64xf32>
    %cst = arith.constant dense<0.000000e+00> : vector<64x64xf32>
    %2 = tpu.matmul %0, %1, %cst {dimension_numbers = #tpu.dot_dimension_numbers<[1], [0], [0], [1], [0, 0, 1, 1], [], []>} : vector<64x64xf32>, vector<64x64xf32>, vector<64x64xf32> -> vector<64x64xf32>
    %c0_3 = arith.constant 0 : index
    %c0_4 = arith.constant 0 : index
    %3 = vector.load %arg3[%c0_3, %c0_4] : memref<1x64xf32, #tpu.memory_space<vmem>>, vector<1x64xf32>
    %4 = vector.broadcast %3 : vector<1x64xf32> to vector<64x64xf32>
    %5 = arith.addf %2, %4 : vector<64x64xf32>
    %c0_5 = arith.constant 0 : index
    %c0_6 = arith.constant 0 : index
    %6 = vector.load %arg4[%c0_5, %c0_6] : memref<64x64xf32, #tpu.memory_space<vmem>>, vector<64x64xf32>
    tpu.vector_store %arg4[%c0_5, %c0_6], %5 {strides = array<i32>} : memref<64x64xf32, #tpu.memory_space<vmem>>, vector<64x64xf32>,
    return
  }
  func.func @transform_0(%arg0: i32) -> (i32, i32) {
    %c0_i32 = arith.constant 0 : i32
    %c0_i32_0 = arith.constant 0 : i32
    return %arg0, %c0_i32 : i32, i32
  }
  func.func @transform_1(%arg0: i32) -> (i32, i32) {
    %c0_i32 = arith.constant 0 : i32
    %c0_i32_0 = arith.constant 0 : i32
    %c0_i32_1 = arith.constant 0 : i32
    return %c0_i32, %c0_i32_0 : i32, i32
  }
  func.func @transform_2(%arg0: i32) -> (i32, i32) {
    %c0_i32 = arith.constant 0 : i32
    %c0_i32_0 = arith.constant 0 : i32
    %c0_i32_1 = arith.constant 0 : i32
    return %c0_i32, %c0_i32_0 : i32, i32
  }
  func.func @transform_3(%arg0: i32) -> (i32, i32) {
    %c0_i32 = arith.constant 0 : i32
    %c0_i32_0 = arith.constant 0 : i32
    return %arg0, %c0_i32 : i32, i32
  }
}

</mosaic_0001>

<llo_original>
// kernel: tpu_custom_call.1
$region0: #{tpu_custom_call.1}
  #allocation0 [shape = 'u32[]', space=smem, size = 0x4, offset = 0x4, fixed_abs, tag = 'smem constant byte address 0x4 - core index']
  #allocation1 [shape = 'u32[144,128]{1,0:T(1,128)}', space=vmem, size = 0x12000, scoped, tag = 'internal scratch']
  %s0 = inlined_call_operand.vmem [shape: f32[128,64], index: 0, kind: input, shape index: {}]
  %s1 = inlined_call_operand.vmem [shape: f32[64,64], index: 1, kind: input, shape index: {}]
  %s2 = inlined_call_operand.vmem [shape: f32[1,64], index: 2, kind: input, shape index: {}]
  %s3 = inlined_call_operand.vmem [shape: f32[128,64], index: 3, kind: output, shape index: {}]
  %s4 = sld [smem:[#allocation0]]
  $region45: #{tpu_custom_call.1} parent=0
    _
  %s6 = ssub.s32 1, %s4
  %s7 = scalar_select 0, %s6, %s4
  loop: start=0, step=1, limit=4
  $region2: #{tpu_custom_call.1} parent=0 // loop_pre_header
    _
  $region3: #{tpu_custom_call.1} parent=0 // loop_header
    %s9 = sphi 0, %s13
    %p10 = scmp.ge.s32.totalorder %s9, 4
    %s19 = sphi 0, %s21
    %s22 = sphi 0, %s19
    %s23 = sphi 0, %s22
    %s39 = sphi 0, %s23
    %s43 = sphi 0, %s43
    %s45 = sphi 0, %s43
    %s46 = sphi 0, %s45
    %s60 = sphi 0, %s46
    %s64 = sphi 0, %s64
    %s66 = sphi 0, %s64
    %s67 = sphi 0, %s66
    %s81 = sphi 0, %s67
    %s87 = sphi 0, %s89
    %s90 = sphi 0, %s87
    %s91 = sphi 0, %s90
    %s107 = sphi 0, %s91
  $region4: #{tpu_custom_call.1} parent=0 // loop_header_branch
    %12 = sbr.rel (%p10) target = $region8
  $region5: #{tpu_custom_call.1} parent=0 // loop_body
    %s14 = ssub.s32 %s9, 1
    %s15 = ssub.s32 %s9, 2
    %s16 = sadd.s32 %s9, 1
    %s17 = ssub.s32 %s9, %s16
    %p18 = scmp.eq.s32.totalorder %s17, 0
    %s20 = sadd.s32 %s19, 1
    %s21 = scalar_select %p18, %s19, %s20
    %p24 = pneg %p18
    %p25 = scmp.eq.s32.totalorder %s9, 1
    %p26 = por %p24, %p25
    %p27 = scmp.ne.s32.totalorder %s19, %s22
    %p28 = scmp.eq.s32.totalorder %s9, 0
    %p29 = por %p27, %p28
    %p30 = scmp.ne.s32.totalorder %s19, %s22
    %p31 = scmp.eq.s32.totalorder %s14, 1
    %p32 = por %p30, %p31
    %p33 = scmp.ne.s32.totalorder %s22, %s23
    %p34 = scmp.eq.s32.totalorder %s14, 0
    %p35 = por %p33, %p34
    %p36 = scmp.ne.s32.totalorder %s22, %s23
    %p37 = scmp.eq.s32.totalorder %s15, 1
    %p38 = por %p36, %p37
    %p40 = scmp.ne.s32.totalorder %s23, %s39
    %p41 = scmp.eq.s32.totalorder %s15, 0
    %p42 = por %p40, %p41
    %s44 = sadd.s32 %s43, 1
    %p47 = scmp.eq.s32.totalorder %s9, 1
    %p48 = scmp.ne.s32.totalorder %s43, %s45
    %p49 = scmp.eq.s32.totalorder %s9, 0
    %p50 = por %p48, %p49
    %p51 = scmp.ne.s32.totalorder %s43, %s45
    %p52 = scmp.eq.s32.totalorder %s14, 1
    %p53 = por %p51, %p52
    %p54 = scmp.ne.s32.totalorder %s45, %s46
    %p55 = scmp.eq.s32.totalorder %s14, 0
    %p56 = por %p54, %p55
    %p57 = scmp.ne.s32.totalorder %s45, %s46
    %p58 = scmp.eq.s32.totalorder %s15, 1
    %p59 = por %p57, %p58
    %p61 = scmp.ne.s32.totalorder %s46, %s60
    %p62 = scmp.eq.s32.totalorder %s15, 0
    %p63 = por %p61, %p62
    %s65 = sadd.s32 %s64, 1
    %p68 = scmp.eq.s32.totalorder %s9, 1
    %p69 = scmp.ne.s32.totalorder %s64, %s66
    %p70 = scmp.eq.s32.totalorder %s9, 0
    %p71 = por %p69, %p70
    %p72 = scmp.ne.s32.totalorder %s64, %s66
    %p73 = scmp.eq.s32.totalorder %s14, 1
    %p74 = por %p72, %p73
    %p75 = scmp.ne.s32.totalorder %s66, %s67
    %p76 = scmp.eq.s32.totalorder %s14, 0
    %p77 = por %p75, %p76
    %p78 = scmp.ne.s32.totalorder %s66, %s67
    %p79 = scmp.eq.s32.totalorder %s15, 1
    %p80 = por %p78, %p79
    %p82 = scmp.ne.s32.totalorder %s67, %s81
    %p83 = scmp.eq.s32.totalorder %s15, 0
    %p84 = por %p82, %p83
    %s85 = ssub.s32 %s9, %s16
    %p86 = scmp.eq.s32.totalorder %s85, 0
    %s88 = sadd.s32 %s87, 1
    %s89 = scalar_select %p86, %s87, %s88
    %p92 = pneg %p86
    %p93 = scmp.eq.s32.totalorder %s9, 1
    %p94 = por %p92, %p93
    %p95 = scmp.ne.s32.totalorder %s87, %s90
    %p96 = scmp.eq.s32.totalorder %s9, 0
    %p97 = por %p95, %p96
    %p98 = scmp.ne.s32.totalorder %s87, %s90
    %p99 = scmp.eq.s32.totalorder %s14, 1
    %p100 = por %p98, %p99
    %p101 = scmp.ne.s32.totalorder %s90, %s91
    %p102 = scmp.eq.s32.totalorder %s14, 0
    %p103 = por %p101, %p102
    %p104 = scmp.ne.s32.totalorder %s90, %s91
    %p105 = scmp.eq.s32.totalorder %s15, 1
    %p106 = por %p104, %p105
    %p108 = scmp.ne.s32.totalorder %s91, %s107
    %p109 = scmp.eq.s32.totalorder %s15, 0
    %p110 = por %p108, %p109
    %p111 = scmp.le.s32.totalorder 1, %s9
    %p112 = scmp.lt.s32.totalorder %s9, 3
    %p113 = pnand %p111, %p112
    %p114 = pneg %p113
    // Predicated region
    $region9: #{tpu_custom_call.1} parent=5 // pred_check
      _
    $region10: #{tpu_custom_call.1} parent=5 // pred_check_branch
      %116 = sbr.rel (%p113) target = $region12
    $region11: #{tpu_custom_call.1} parent=5 // pred_region
      %s117 = ssub.s32 %s9, 1
      // Predicated region
      $region13: #{tpu_custom_call.1} parent=11 // pred_check
        %p118 = pneg %p56
      $region14: #{tpu_custom_call.1} parent=11 // pred_check_branch
        %120 = sbr.rel (%p118) target = $region16
      $region15: #{tpu_custom_call.1} parent=11 // pred_region
        _
      $region16: #{tpu_custom_call.1} parent=11 // pred_fallthru
        _
      // Predicated region
      $region17: #{tpu_custom_call.1} parent=11 // pred_check
        %p121 = pneg %p77
      $region18: #{tpu_custom_call.1} parent=11 // pred_check_branch
        %123 = sbr.rel (%p121) target = $region20
      $region19: #{tpu_custom_call.1} parent=11 // pred_region
        _
      $region20: #{tpu_custom_call.1} parent=11 // pred_fallthru
        _
    $region12: #{tpu_custom_call.1} parent=5 // pred_fallthru
      _
    %p124 = scmp.lt.s32.totalorder %s9, 2
    // Predicated region
    $region21: #{tpu_custom_call.1} parent=5 // pred_check
      %p125 = pneg %p124
    $region22: #{tpu_custom_call.1} parent=5 // pred_check_branch
      %127 = sbr.rel (%p125) target = $region24
    $region23: #{tpu_custom_call.1} parent=5 // pred_region
      // Predicated region
      $region25: #{tpu_custom_call.1} parent=23 // pred_check
        %p128 = pneg %p29
      $region26: #{tpu_custom_call.1} parent=23 // pred_check_branch
        %130 = sbr.rel (%p128) target = $region28
      $region27: #{tpu_custom_call.1} parent=23 // pred_region
        %s131 = smul.u32 8, %s9
        %p132 = scmp.lt.s32.totalorder %s131, 15
        %s133 = scalar_select %p132, %s131, 15
        %s134 = smul.addr %s133, 8
        %s135 = scalar_lea.vmem %s0, %s134
        %s136 = smul.u32 8, %s9
      $region28: #{tpu_custom_call.1} parent=23 // pred_fallthru
        _
    $region24: #{tpu_custom_call.1} parent=5 // pred_fallthru
      _
    %p137 = scmp.le.s32.totalorder 1, %s9
    %p138 = scmp.lt.s32.totalorder %s9, 3
    %p139 = pnand %p137, %p138
    %p140 = pneg %p139
    // Predicated region
    $region29: #{tpu_custom_call.1} parent=5 // pred_check
      _
    $region30: #{tpu_custom_call.1} parent=5 // pred_check_branch
      %142 = sbr.rel (%p139) target = $region32
    $region31: #{tpu_custom_call.1} parent=5 // pred_region
      %s143 = ssub.s32 %s9, 1
      %s144 = smul.u32 8, %s14
      %p145 = scmp.lt.s32.totalorder %s144, 15
      %s146 = scalar_select %p145, %s144, 15
      %s147 = smul.addr %s146, 8
      %s148 = scalar_lea.vmem %s0, %s147
      %p149 = pneg %p35
      %p150 = pneg %p32
      %p151 = pneg %p56
      %p152 = pneg %p53
      %p153 = pneg %p77
      %p154 = pneg %p74
      %p155 = pneg %p103
      %p156 = pneg %p100
      %s157 = smul.u32 8, %s14
      %p158 = scmp.lt.s32.totalorder %s157, 15
      %s159 = scalar_select %p158, %s157, 15
      %s160 = smul.addr %s159, 8
      %s161 = scalar_lea.vmem %s3, %s160
      %s162 = smul.u32 8, %s14
      %p163 = scmp.lt.s32.totalorder %s162, 15
      %s164 = scalar_select %p163, %s162, 15
      %s165 = smul.addr %s164, 8
      %s166 = scalar_lea.vmem %s0, %s165
      %s167 = smul.u32 8, %s14
      %s168 = smul.u32 8, %s14
      %p169 = scmp.lt.s32.totalorder %s168, 15
      %s170 = scalar_select %p169, %s168, 15
      %s171 = smul.addr %s170, 8
      %s172 = scalar_lea.vmem %s3, %s171
      %s173 = smul.u32 8, %s14
      %v174 = vld [vmem:[%s166] sm:$0xff]
      %v175 = vld [vmem:[%s166 + $0x8] sm:$0xff]
      %v176 = vld [vmem:[%s166 + $0x10] sm:$0xff]
      %v177 = vld [vmem:[%s166 + $0x18] sm:$0xff]
      %v178 = vld [vmem:[%s166 + $0x20] sm:$0xff]
      %v179 = vld [vmem:[%s166 + $0x28] sm:$0xff]
      %v180 = vld [vmem:[%s166 + $0x30] sm:$0xff]
      %v181 = vld [vmem:[%s166 + $0x38] sm:$0xff]
      %v182 = vld [vmem:[%s1] sm:$0xff]
      %v183 = vld [vmem:[%s1 + $0x8] sm:$0xff]
      %v184 = vld [vmem:[%s1 + $0x10] sm:$0xff]
      %v185 = vld [vmem:[%s1 + $0x18] sm:$0xff]
      %v186 = vld [vmem:[%s1 + $0x20] sm:$0xff]
      %v187 = vld [vmem:[%s1 + $0x28] sm:$0xff]
      %v188 = vld [vmem:[%s1 + $0x30] sm:$0xff]
      %v189 = vld [vmem:[%s1 + $0x38] sm:$0xff]
      %v190 = vld [vmem:[%s2] sm:$0x1]
      %v192 = vlaneseq
      %v193 = vshrl.u32 %v192, 7
      %v194 = vsub.s32 0, %v193
      %v195 = vrot.slane %v190, %v194
      %vm197 = vcmask 523264
      %v199 = vsel %vm197, %v174, 0
      %v202 = vsel %vm197, %v175, 0
      %v205 = vsel %vm197, %v176, 0
      %v208 = vsel %vm197, %v177, 0
      %v211 = vsel %vm197, %v178, 0
      %v214 = vsel %vm197, %v179, 0
      %v217 = vsel %vm197, %v180, 0
      %v220 = vsel %vm197, %v181, 0
      %222 = vmatprep.subr.mxu0 0.0
      %223 = vmatpush1.msra.mxu0 %v182
      %224 = vmatprep.subr.mxu0 0.0
      %225 = vmatpush1.msra.mxu0 %v183
      %226 = vmatprep.subr.mxu0 0.0
      %227 = vmatpush1.msra.mxu0 %v184
      %228 = vmatprep.subr.mxu0 0.0
      %229 = vmatpush1.msra.mxu0 %v185
      %230 = vmatprep.subr.mxu0 0.0
      %231 = vmatpush1.msra.mxu0 %v186
      %232 = vmatprep.subr.mxu0 0.0
      %233 = vmatpush1.msra.mxu0 %v187
      %234 = vmatprep.subr.mxu0 0.0
      %235 = vmatpush1.msra.mxu0 %v188
      %236 = vmatprep.subr.mxu0 0.0
      %237 = vmatpush1.msra.mxu0 %v189
      %238 = vmatprep.subr.mxu0 0.0
      %239 = vmatpush1.msra.mxu0 0.0
      %240 = vmatprep.subr.mxu0 0.0
      %241 = vmatpush1.msra.mxu0 0.0
      %242 = vmatprep.subr.mxu0 0.0
      %243 = vmatpush1.msra.mxu0 0.0
      %244 = vmatprep.subr.mxu0 0.0
      %245 = vmatpush1.msra.mxu0 0.0
      %246 = vmatprep.subr.mxu0 0.0
      %247 = vmatpush1.msra.mxu0 0.0
      %248 = vmatprep.subr.mxu0 0.0
      %249 = vmatpush1.msra.mxu0 0.0
      %250 = vmatprep.subr.mxu0 0.0
      %251 = vmatpush1.msra.mxu0 0.0
      %252 = vmatprep.subr.mxu0 0.0
      %253 = vmatpush1.msra.mxu0 0.0
      %254 = vmatprep.subr.mxu0 0.0
      %255 = vmatpush1.msra.mxu0 0.0
      %256 = vmatprep.subr.mxu0 0.0
      %257 = vmatpush1.msra.mxu0 0.0
      %258 = vmatprep.subr.mxu0 0.0
      %259 = vmatpush1.msra.mxu0 0.0
      %260 = vmatprep.subr.mxu0 0.0
      %261 = vmatpush1.msra.mxu0 0.0
      %262 = vmatprep.subr.mxu0 0.0
      %263 = vmatpush1.msra.mxu0 0.0
      %264 = vmatprep.subr.mxu0 0.0
      %265 = vmatpush1.msra.mxu0 0.0
      %266 = vmatprep.subr.mxu0 0.0
      %267 = vmatpush1.msra.mxu0 0.0
      %268 = vmatprep.subr.mxu0 0.0
      %269 = vmatpush1.msra.mxu0 0.0
      %270 = vmatprep.subr.mxu0 0.0
      %271 = vmatpush1.msra.mxu0 0.0
      %272 = vmatprep.subr.mxu0 0.0
      %273 = vmatpush1.msra.mxu0 0.0
      %274 = vmatprep.subr.mxu0 0.0
      %275 = vmatpush1.msra.mxu0 0.0
      %276 = vmatprep.subr.mxu0 0.0
      %277 = vmatpush1.msra.mxu0 0.0
      %278 = vmatprep.subr.mxu0 0.0
      %279 = vmatpush1.msra.mxu0 0.0
      %280 = vmatprep.subr.mxu0 0.0
      %281 = vmatpush1.msra.mxu0 0.0
      %282 = vmatprep.subr.mxu0 0.0
      %283 = vmatpush1.msra.mxu0 0.0
      %284 = vmatprep.subr.mxu0 0.0
      %285 = vmatpush1.msra.mxu0 0.0
      %286 = vmatprep.mubr.f32.mxu0 0.0
      %287 = vmatmul.mubr.f32.gmra.mrb[0].mxu0 %v199
      %v288 = vpop.f32.mrb[0].mxu0
      %v289 = vadd.f32 %v195, %v288
      %v290 = vpop.f32.mrb[0].mxu0
      %291 = vmatprep.mubr.f32.mxu0 0.0
      %292 = vmatmul.mubr.f32.gmra.mrb[0].mxu0 %v202
      %v293 = vpop.f32.mrb[0].mxu0
      %v294 = vadd.f32 %v195, %v293
      %v295 = vpop.f32.mrb[0].mxu0
      %296 = vmatprep.mubr.f32.mxu0 0.0
      %297 = vmatmul.mubr.f32.gmra.mrb[0].mxu0 %v205
      %v298 = vpop.f32.mrb[0].mxu0
      %v299 = vadd.f32 %v195, %v298
      %v300 = vpop.f32.mrb[0].mxu0
      %301 = vmatprep.mubr.f32.mxu0 0.0
      %302 = vmatmul.mubr.f32.gmra.mrb[0].mxu0 %v208
      %v303 = vpop.f32.mrb[0].mxu0
      %v304 = vadd.f32 %v195, %v303
      %v305 = vpop.f32.mrb[0].mxu0
      %306 = vmatprep.mubr.f32.mxu0 0.0
      %307 = vmatmul.mubr.f32.gmra.mrb[0].mxu0 %v211
      %v308 = vpop.f32.mrb[0].mxu0
      %v309 = vadd.f32 %v195, %v308
      %v310 = vpop.f32.mrb[0].mxu0
      %311 = vmatprep.mubr.f32.mxu0 0.0
      %312 = vmatmul.mubr.f32.gmra.mrb[0].mxu0 %v214
      %v313 = vpop.f32.mrb[0].mxu0
      %v314 = vadd.f32 %v195, %v313
      %v315 = vpop.f32.mrb[0].mxu0
      %316 = vmatprep.mubr.f32.mxu0 0.0
      %317 = vmatmul.mubr.f32.gmra.mrb[0].mxu0 %v217
      %v318 = vpop.f32.mrb[0].mxu0
      %v319 = vadd.f32 %v195, %v318
      %v320 = vpop.f32.mrb[0].mxu0
      %321 = vmatprep.mubr.f32.mxu0 0.0
      %322 = vmatmul.mubr.f32.gmra.mrb[0].mxu0 %v220
      %v323 = vpop.f32.mrb[0].mxu0
      %v324 = vadd.f32 %v195, %v323
      %v325 = vpop.f32.mrb[0].mxu0
      %326 = vdwg.mxu0
      %327 = vst.msk [vmem:[%s172] sm:$0xff] %vm197, %v289
      %328 = vst.msk [vmem:[%s172 + $0x8] sm:$0xff] %vm197, %v294
      %329 = vst.msk [vmem:[%s172 + $0x10] sm:$0xff] %vm197, %v299
      %330 = vst.msk [vmem:[%s172 + $0x18] sm:$0xff] %vm197, %v304
      %331 = vst.msk [vmem:[%s172 + $0x20] sm:$0xff] %vm197, %v309
      %332 = vst.msk [vmem:[%s172 + $0x28] sm:$0xff] %vm197, %v314
      %333 = vst.msk [vmem:[%s172 + $0x30] sm:$0xff] %vm197, %v319
      %334 = vst.msk [vmem:[%s172 + $0x38] sm:$0xff] %vm197, %v324
      %s335 = smul.u32 8, %s14
      %p336 = scmp.lt.s32.totalorder %s335, 15
      %s337 = scalar_select %p336, %s335, 15
      %s338 = smul.addr %s337, 8
      %s339 = scalar_lea.vmem %s3, %s338
      // Predicated region
      $region33: #{tpu_custom_call.1} parent=31 // pred_check
        %p340 = pneg %p100
      $region34: #{tpu_custom_call.1} parent=31 // pred_check_branch
        %342 = sbr.rel (%p340) target = $region36
      $region35: #{tpu_custom_call.1} parent=31 // pred_region
        %s343 = smul.u32 8, %s14
      $region36: #{tpu_custom_call.1} parent=31 // pred_fallthru
        _
    $region32: #{tpu_custom_call.1} parent=5 // pred_fallthru
      _
    %p344 = scmp.le.s32.totalorder 2, %s9
    // Predicated region
    $region37: #{tpu_custom_call.1} parent=5 // pred_check
      %p345 = pneg %p344
    $region38: #{tpu_custom_call.1} parent=5 // pred_check_branch
      %347 = sbr.rel (%p345) target = $region40
    $region39: #{tpu_custom_call.1} parent=5 // pred_region
      %s348 = ssub.s32 %s9, 2
      // Predicated region
      $region41: #{tpu_custom_call.1} parent=39 // pred_check
        %p349 = pneg %p106
      $region42: #{tpu_custom_call.1} parent=39 // pred_check_branch
        %351 = sbr.rel (%p349) target = $region44
      $region43: #{tpu_custom_call.1} parent=39 // pred_region
        %s352 = smul.u32 8, %s15
        %p353 = scmp.lt.s32.totalorder %s352, 15
        %s354 = scalar_select %p353, %s352, 15
        %s355 = smul.addr %s354, 8
        %s356 = scalar_lea.vmem %s3, %s355
      $region44: #{tpu_custom_call.1} parent=39 // pred_fallthru
        _
    $region40: #{tpu_custom_call.1} parent=5 // pred_fallthru
      _
  $region6: #{tpu_custom_call.1} parent=0 // loop_footer
    %s13 = sadd.s32 1, %s9
  $region7: #{tpu_custom_call.1} parent=0 // loop_footer_branch
    %8 = sbr.rel target = $region3
  $region8: #{tpu_custom_call.1} parent=0 // loop_exit
    _

</llo_original>
